<compile_context>
chip_gen: v7x
topology: tpu7x:2x2x1
jax: 0.10.0
libtpu: 0.0.40
codegen_flags: <defaults>
</compile_context>

<pallas_src>
import math
from functools import partial

import jax
import jax.numpy as jnp
from jax import lax
from jax.experimental import pallas as pl
from jax.experimental.pallas import tpu as pltpu


def _round_up(n: int, m: int) -> int:
    return ((n + m - 1) // m) * m


def _fff_kernel(x_ref, Xw_ref, Yw_ref, y_ref, *, depth: int, nodes_p: int):
    x = x_ref[...]                                   # (TB, F)   native dtype
    Xw = Xw_ref[...]                                 # (Np, F)   native dtype
    Yw = Yw_ref[...]                                 # (Np, F)   native dtype
    tb = x.shape[0]

    # Lambda against every node in one MXU matmul, TRANSPOSED so batch rows
    # sit on the lane axis: (Np, F) x (TB, F) contracted on features
    # -> (Np, TB), f32 accumulate.  MXU sees N = TB.
    lam_t = lax.dot_general(Xw, x, (((1,), (1,)), ((), ())),
                            preferred_element_type=jnp.float32)

    node_ids = lax.broadcasted_iota(jnp.int32, (nodes_p, tb), 0)   # node on sublanes
    gr_all = (lam_t > 0).astype(jnp.int32)           # branch bits, hoisted out of loop

    cur = jnp.zeros((1, tb), dtype=jnp.int32)        # current tree node per row
    coeff_t = jnp.zeros((nodes_p, tb), dtype=jnp.float32)  # per-node output weight

    # depth = floor(log2(F)) is tiny -> static unroll.  Per level: one VPU
    # compare, one select+add (no reduce on the coeff path), one masked
    # sublane reduce of the int branch mask, and a tiny (1, TB) index update.
    for _ in range(depth):
        onehot = node_ids == cur                                   # (Np, TB) bool
        coeff_t = coeff_t + jnp.where(onehot, lam_t, 0.0)          # defer Yw matmul
        branch = jnp.sum(jnp.where(onehot, gr_all, 0),
                         axis=0, keepdims=True)                    # (1, TB)
        cur = cur * 2 + 1 + branch                                 # strict >, ties -> left

    # Single fused contraction over the node axis replaces the `depth` small
    # per-level matmuls: (Np, TB)^T @ (Np, F) -> (TB, F).
    lhs = coeff_t if Yw.dtype == jnp.float32 else coeff_t.astype(Yw.dtype)
    y_ref[...] = lax.dot_general(lhs, Yw, (((0,), (0,)), ((), ())),
                                 preferred_element_type=jnp.float32)


def fast_feed_forward(x, Xw, Yw, *, depth: int, tile_rows: int = 4096,
                      min_grid_steps: int = 2):
    """Pallas FastFeedForward forward pass.

    x:  arbitrary shape, total size divisible by `features` (features last).
    Xw: (nodes, features) node decision vectors, nodes == 2**depth - 1.
    Yw: (nodes, features) node output vectors.
    Returns float32 output with the same shape as x (matches PyTorch module).
    """
    nodes, features = Xw.shape
    assert nodes == 2 ** depth - 1, "Xw rows must equal 2**depth - 1"
    assert Yw.shape == (nodes, features), "Yw must match Xw shape"
    assert x.size % features == 0, "x size must be divisible by features"

    orig_shape = x.shape
    x2 = x.reshape(-1, features)            # native dtype; no upcast (HBM stream)
    b_total = x2.shape[0]

    # Pad the node axis to a multiple of 8 (clean sublane tiling).  Zero rows
    # are never routed to and contribute nothing -> semantics preserving.
    nodes_p = _round_up(nodes, 8)
    pad_n = nodes_p - nodes
    Xw_p = jnp.pad(Xw, ((0, pad_n), (0, 0))) if pad_n else Xw
    Yw_p = jnp.pad(Yw, ((0, pad_n), (0, 0))) if pad_n else Yw

    # Row tile: large to amortize ~0.35us per-grid-step overhead, multiple of 8.
    tr = max(8, _round_up(min(tile_rows, b_total), 8))

    # Keep >= min_grid_steps grid steps (when there are enough rows) so the
    # "parallel" grid axis actually shards rows across both TensorCores on
    # v7x-style megacore parts.
    if min_grid_steps > 1 and b_total >= min_grid_steps * 8:
        tr = min(tr, max(8, _round_up(pl.cdiv(b_total, min_grid_steps), 8)))

    # Conservative per-tile VMEM budget: double-buffered x/out blocks plus the
    # f32/i32 traversal intermediates.  12 MiB keeps us well inside v5e's
    # 16 MiB scoped default and v7x's 64 MiB physical VMEM without needing a
    # custom vmem_limit_bytes.
    bytes_per_row = (2 * features * x2.dtype.itemsize   # x block, double-buffered
                     + 2 * features * 4                 # f32 out block, double-buffered
                     + 6 * nodes_p * 4)                 # lam/gr/coeff/onehot/ids/tmp
    vmem_budget = 12 * 1024 * 1024
    tr = min(tr, max(8, (vmem_budget // bytes_per_row) // 8 * 8))

    b_pad = _round_up(b_total, tr)
    if b_pad != b_total:
        x2 = jnp.pad(x2, ((0, b_pad - b_total), (0, 0)))

    kernel = partial(_fff_kernel, depth=depth, nodes_p=nodes_p)

    out = pl.pallas_call(
        kernel,
        out_shape=jax.ShapeDtypeStruct((b_pad, features), jnp.float32),
        grid_spec=pltpu.PrefetchScalarGridSpec(
            num_scalar_prefetch=0,
            grid=(b_pad // tr,),
            in_specs=[
                pl.BlockSpec((tr, features), lambda i: (i, 0)),
                # Weight tables: constant block index -> resident in VMEM.
                pl.BlockSpec((nodes_p, features), lambda i: (0, 0)),
                pl.BlockSpec((nodes_p, features), lambda i: (0, 0)),
            ],
            out_specs=pl.BlockSpec((tr, features), lambda i: (i, 0)),
        ),
        compiler_params=pltpu.CompilerParams(
            dimension_semantics=("parallel",)),
    )(x2, Xw_p, Yw_p)

    if b_pad != b_total:
        out = out[:b_total]
    return out.reshape(orig_shape)


def _reference(x, Xw, Yw, depth):
    """Pure-JAX port of the PyTorch forward, for verification."""
    features = Xw.shape[-1]
    xr = x.reshape(-1, features).astype(jnp.float32)
    b = xr.shape[0]
    cur = jnp.zeros((b,), dtype=jnp.int32)
    y = jnp.zeros((b, features), dtype=jnp.float32)
    Xf = Xw.astype(jnp.float32)
    Yf = Yw.astype(jnp.float32)
    for _ in range(depth):
        lam = jnp.einsum("bi,bi->b", xr, Xf[cur])
        y = y + lam[:, None] * Yf[cur]
        cur = cur * 2 + 1 + (lam > 0).astype(jnp.int32)
    return y.reshape(x.shape)


if __name__ == "__main__":
    # Module config: features=32 -> depth=5, nodes=2**5-1=31
    features = 32
    depth = int(math.floor(math.log2(features)))
    nodes = 2 ** depth - 1

    key = jax.random.PRNGKey(0)
    kx, kX, kY, kx2 = jax.random.split(key, 4)

    # init='hyperspherical-shell': random unit vectors per node.
    Xw = jax.random.normal(kX, (nodes, features), dtype=jnp.float32)
    Xw = Xw / jnp.linalg.norm(Xw, axis=-1, keepdims=True)
    Yw = jax.random.normal(kY, (nodes, features), dtype=jnp.float32)
    Yw = Yw / jnp.linalg.norm(Yw, axis=-1, keepdims=True)

    # Test 1: module-shaped input (batch=2, seq=8, features=32) -> 16 rows.
    x = jax.random.normal(kx, (2, 8, features), dtype=jnp.float32)
    out = jax.block_until_ready(fast_feed_forward(x, Xw, Yw, depth=depth))
    ref = _reference(x, Xw, Yw, depth)
    assert out.shape == x.shape and out.dtype == jnp.float32
    assert jnp.allclose(out, ref, atol=1e-5, rtol=1e-5), "mismatch vs reference (t1)"

    # Test 2: ragged row count + small tile to exercise internal padding and a
    # multi-step grid (400 rows, tile 128 -> pad to 512, 4 grid steps).
    x2 = jax.random.normal(kx2, (4, 100, features), dtype=jnp.float32)
    out2 = jax.block_until_ready(
        fast_feed_forward(x2, Xw, Yw, depth=depth, tile_rows=128))
    ref2 = _reference(x2, Xw, Yw, depth)
    assert out2.shape == x2.shape
    assert jnp.allclose(out2, ref2, atol=1e-5, rtol=1e-5), "mismatch vs reference (t2)"

    print("KERNEL_OK")
</pallas_src>

<mosaic_0001>
module attributes {stable_mosaic.version = 11 : i64} {
  func.func @_fff_kernel(%arg0: i32, %arg1: memref<8x32xf32, #tpu.memory_space<vmem>>, %arg2: memref<32x32xf32, #tpu.memory_space<vmem>>, %arg3: memref<32x32xf32, #tpu.memory_space<vmem>>, %arg4: memref<8x32xf32, #tpu.memory_space<vmem>>) attributes {dimension_semantics = [#tpu.dimension_semantics<parallel>], iteration_bounds = array<i64: 2>, scalar_prefetch = 0 : i64, scratch_operands = 0 : i64, tpu.core_type = #tpu.core_type<tc>, window_params = [{transform_indices = @transform_0, window_bounds = array<i64: 8, 32>}, {pipeline_mode = #tpu.pipeline_mode<synchronous>, transform_indices = @transform_1, window_bounds = array<i64: 32, 32>}, {pipeline_mode = #tpu.pipeline_mode<synchronous>, transform_indices = @transform_2, window_bounds = array<i64: 32, 32>}, {transform_indices = @transform_3, window_bounds = array<i64: 8, 32>}]} {
    %c0 = arith.constant 0 : index
    %c0_0 = arith.constant 0 : index
    %0 = vector.load %arg1[%c0, %c0_0] : memref<8x32xf32, #tpu.memory_space<vmem>>, vector<8x32xf32>
    %c0_1 = arith.constant 0 : index
    %c0_2 = arith.constant 0 : index
    %1 = vector.load %arg2[%c0_1, %c0_2] : memref<32x32xf32, #tpu.memory_space<vmem>>, vector<32x32xf32>
    %c0_3 = arith.constant 0 : index
    %c0_4 = arith.constant 0 : index
    %2 = vector.load %arg3[%c0_3, %c0_4] : memref<32x32xf32, #tpu.memory_space<vmem>>, vector<32x32xf32>
    %cst = arith.constant dense<0.000000e+00> : vector<32x8xf32>
    %3 = tpu.matmul %1, %0, %cst {dimension_numbers = #tpu.dot_dimension_numbers<[1], [1], [0], [0], [0, 0, 1, 0], [], []>} : vector<32x32xf32>, vector<8x32xf32>, vector<32x8xf32> -> vector<32x8xf32>
    %4 = tpu.iota {dimensions = array<i32: 0>} : vector<32x8xi32>
    %cst_5 = arith.constant 0.000000e+00 : f32
    %5 = vector.broadcast %cst_5 : f32 to vector<32x8xf32>
    %6 = arith.cmpf ogt, %3, %5 : vector<32x8xf32>
    %7 = arith.extui %6 : vector<32x8xi1> to vector<32x8xi32>
    %c0_i32 = arith.constant 0 : i32
    %8 = vector.broadcast %c0_i32 : i32 to vector<1x8xi32>
    %cst_6 = arith.constant 0.000000e+00 : f32
    %9 = vector.broadcast %cst_6 : f32 to vector<32x8xf32>
    %10 = vector.broadcast %8 : vector<1x8xi32> to vector<32x8xi32>
    %11 = arith.cmpi eq, %4, %10 : vector<32x8xi32>
    %cst_7 = arith.constant 0.000000e+00 : f32
    %12 = vector.broadcast %cst_7 : f32 to vector<32x8xf32>
    %13 = arith.select %11, %3, %12 : vector<32x8xi1>, vector<32x8xf32>
    %14 = arith.addf %9, %13 : vector<32x8xf32>
    %c0_i32_8 = arith.constant 0 : i32
    %15 = vector.broadcast %c0_i32_8 : i32 to vector<32x8xi32>
    %16 = arith.select %11, %7, %15 : vector<32x8xi1>, vector<32x8xi32>
    %cst_9 = arith.constant dense<0> : vector<8xi32>
    %17 = vector.multi_reduction <add>, %16, %cst_9 [0] : vector<32x8xi32> to vector<8xi32>
    %18 = vector.shape_cast %17 : vector<8xi32> to vector<1x8xi32>
    %c2_i32 = arith.constant 2 : i32
    %19 = vector.broadcast %c2_i32 : i32 to vector<1x8xi32>
    %20 = arith.muli %8, %19 : vector<1x8xi32>
    %c1_i32 = arith.constant 1 : i32
    %21 = vector.broadcast %c1_i32 : i32 to vector<1x8xi32>
    %22 = arith.addi %20, %21 : vector<1x8xi32>
    %23 = arith.addi %22, %18 : vector<1x8xi32>
    %24 = vector.broadcast %23 : vector<1x8xi32> to vector<32x8xi32>
    %25 = arith.cmpi eq, %4, %24 : vector<32x8xi32>
    %cst_10 = arith.constant 0.000000e+00 : f32
    %26 = vector.broadcast %cst_10 : f32 to vector<32x8xf32>
    %27 = arith.select %25, %3, %26 : vector<32x8xi1>, vector<32x8xf32>
    %28 = arith.addf %14, %27 : vector<32x8xf32>
    %c0_i32_11 = arith.constant 0 : i32
    %29 = vector.broadcast %c0_i32_11 : i32 to vector<32x8xi32>
    %30 = arith.select %25, %7, %29 : vector<32x8xi1>, vector<32x8xi32>
    %cst_12 = arith.constant dense<0> : vector<8xi32>
    %31 = vector.multi_reduction <add>, %30, %cst_12 [0] : vector<32x8xi32> to vector<8xi32>
    %32 = vector.shape_cast %31 : vector<8xi32> to vector<1x8xi32>
    %c2_i32_13 = arith.constant 2 : i32
    %33 = vector.broadcast %c2_i32_13 : i32 to vector<1x8xi32>
    %34 = arith.muli %23, %33 : vector<1x8xi32>
    %c1_i32_14 = arith.constant 1 : i32
    %35 = vector.broadcast %c1_i32_14 : i32 to vector<1x8xi32>
    %36 = arith.addi %34, %35 : vector<1x8xi32>
    %37 = arith.addi %36, %32 : vector<1x8xi32>
    %38 = vector.broadcast %37 : vector<1x8xi32> to vector<32x8xi32>
    %39 = arith.cmpi eq, %4, %38 : vector<32x8xi32>
    %cst_15 = arith.constant 0.000000e+00 : f32
    %40 = vector.broadcast %cst_15 : f32 to vector<32x8xf32>
    %41 = arith.select %39, %3, %40 : vector<32x8xi1>, vector<32x8xf32>
    %42 = arith.addf %28, %41 : vector<32x8xf32>
    %c0_i32_16 = arith.constant 0 : i32
    %43 = vector.broadcast %c0_i32_16 : i32 to vector<32x8xi32>
    %44 = arith.select %39, %7, %43 : vector<32x8xi1>, vector<32x8xi32>
    %cst_17 = arith.constant dense<0> : vector<8xi32>
    %45 = vector.multi_reduction <add>, %44, %cst_17 [0] : vector<32x8xi32> to vector<8xi32>
    %46 = vector.shape_cast %45 : vector<8xi32> to vector<1x8xi32>
    %c2_i32_18 = arith.constant 2 : i32
    %47 = vector.broadcast %c2_i32_18 : i32 to vector<1x8xi32>
    %48 = arith.muli %37, %47 : vector<1x8xi32>
    %c1_i32_19 = arith.constant 1 : i32
    %49 = vector.broadcast %c1_i32_19 : i32 to vector<1x8xi32>
    %50 = arith.addi %48, %49 : vector<1x8xi32>
    %51 = arith.addi %50, %46 : vector<1x8xi32>
    %52 = vector.broadcast %51 : vector<1x8xi32> to vector<32x8xi32>
    %53 = arith.cmpi eq, %4, %52 : vector<32x8xi32>
    %cst_20 = arith.constant 0.000000e+00 : f32
    %54 = vector.broadcast %cst_20 : f32 to vector<32x8xf32>
    %55 = arith.select %53, %3, %54 : vector<32x8xi1>, vector<32x8xf32>
    %56 = arith.addf %42, %55 : vector<32x8xf32>
    %c0_i32_21 = arith.constant 0 : i32
    %57 = vector.broadcast %c0_i32_21 : i32 to vector<32x8xi32>
    %58 = arith.select %53, %7, %57 : vector<32x8xi1>, vector<32x8xi32>
    %cst_22 = arith.constant dense<0> : vector<8xi32>
    %59 = vector.multi_reduction <add>, %58, %cst_22 [0] : vector<32x8xi32> to vector<8xi32>
    %60 = vector.shape_cast %59 : vector<8xi32> to vector<1x8xi32>
    %c2_i32_23 = arith.constant 2 : i32
    %61 = vector.broadcast %c2_i32_23 : i32 to vector<1x8xi32>
    %62 = arith.muli %51, %61 : vector<1x8xi32>
    %c1_i32_24 = arith.constant 1 : i32
    %63 = vector.broadcast %c1_i32_24 : i32 to vector<1x8xi32>
    %64 = arith.addi %62, %63 : vector<1x8xi32>
    %65 = arith.addi %64, %60 : vector<1x8xi32>
    %66 = vector.broadcast %65 : vector<1x8xi32> to vector<32x8xi32>
    %67 = arith.cmpi eq, %4, %66 : vector<32x8xi32>
    %cst_25 = arith.constant 0.000000e+00 : f32
    %68 = vector.broadcast %cst_25 : f32 to vector<32x8xf32>
    %69 = arith.select %67, %3, %68 : vector<32x8xi1>, vector<32x8xf32>
    %70 = arith.addf %56, %69 : vector<32x8xf32>
    %cst_26 = arith.constant dense<0.000000e+00> : vector<8x32xf32>
    %71 = tpu.matmul %70, %2, %cst_26 {dimension_numbers = #tpu.dot_dimension_numbers<[0], [0], [1], [1], [0, 1, 1, 1], [], []>} : vector<32x8xf32>, vector<32x32xf32>, vector<8x32xf32> -> vector<8x32xf32>
    %c0_27 = arith.constant 0 : index
    %c0_28 = arith.constant 0 : index
    %72 = vector.load %arg4[%c0_27, %c0_28] : memref<8x32xf32, #tpu.memory_space<vmem>>, vector<8x32xf32>
    tpu.vector_store %arg4[%c0_27, %c0_28], %71 {strides = array<i32>} : memref<8x32xf32, #tpu.memory_space<vmem>>, vector<8x32xf32>,
    return
  }
  func.func @transform_0(%arg0: i32) -> (i32, i32) {
    %c0_i32 = arith.constant 0 : i32
    %c0_i32_0 = arith.constant 0 : i32
    return %arg0, %c0_i32 : i32, i32
  }
  func.func @transform_1(%arg0: i32) -> (i32, i32) {
    %c0_i32 = arith.constant 0 : i32
    %c0_i32_0 = arith.constant 0 : i32
    %c0_i32_1 = arith.constant 0 : i32
    return %c0_i32, %c0_i32_0 : i32, i32
  }
  func.func @transform_2(%arg0: i32) -> (i32, i32) {
    %c0_i32 = arith.constant 0 : i32
    %c0_i32_0 = arith.constant 0 : i32
    %c0_i32_1 = arith.constant 0 : i32
    return %c0_i32, %c0_i32_0 : i32, i32
  }
  func.func @transform_3(%arg0: i32) -> (i32, i32) {
    %c0_i32 = arith.constant 0 : i32
    %c0_i32_0 = arith.constant 0 : i32
    return %arg0, %c0_i32 : i32, i32
  }
}

</mosaic_0001>

<llo_original>
// kernel: tpu_custom_call.1
$region0: #{tpu_custom_call.1}
  #allocation0 [shape = 'u32[]', space=smem, size = 0x4, offset = 0x4, fixed_abs, tag = 'smem constant byte address 0x4 - core index']
  #allocation1 [shape = 'u32[144,128]{1,0:T(1,128)}', space=vmem, size = 0x12000, scoped, tag = 'internal scratch']
  %s0 = inlined_call_operand.hbm [shape: f32[16,32], index: 0, kind: input, shape index: {}]
  %s1 = inlined_call_operand.hbm [shape: f32[32,32], index: 1, kind: input, shape index: {}]
  %s2 = inlined_call_operand.hbm [shape: f32[32,32], index: 2, kind: input, shape index: {}]
  %s3 = inlined_call_operand.hbm [shape: f32[16,32], index: 3, kind: output, shape index: {}]
  %s4 = sld [smem:[#allocation0]]
  $region57: #{tpu_custom_call.1} parent=0
    _
  %s6 = ssub.s32 1, %s4
  %s7 = scalar_select 0, %s6, %s4
  $region1: #{tpu_custom_call.1} parent=0
    #allocation2 [shape = 'u8[8192]{0}', space=vmem, size = 0x2000, scoped, tag = 'input window, operand 0']
    #allocation3 [shape = 's32[2]{0}', space=sflag, size = 0x8, scoped, tag = 'scoped memory for tpu_custom_call.1']
    #allocation4 [shape = 's32[2]{0}', space=sflag, size = 0x8, scoped, tag = 'scoped memory for tpu_custom_call.1']
    #allocation5 [shape = 'u8[16384]{0}', space=vmem, size = 0x4000, scoped, tag = 'input window, operand 1, single buffered']
    #allocation6 [shape = 's32[1]{0}', space=sflag, size = 0x4, scoped, tag = 'scoped memory for tpu_custom_call.1']
    #allocation7 [shape = 'u8[16384]{0}', space=vmem, size = 0x4000, scoped, tag = 'input window, operand 2, single buffered']
    #allocation8 [shape = 'u8[8192]{0}', space=vmem, size = 0x2000, scoped, tag = 'output window, operand 0']
    %8 = vsyncpa [#allocation3], 0
    %s9 = scalar_lea.sflag [#allocation3], 1
    %10 = vsyncpa %s9, 0
    %11 = vsyncpa [#allocation6], 0
    %12 = vsyncpa [#allocation4], 0
    %s13 = scalar_lea.sflag [#allocation4], 1
    %14 = vsyncpa %s13, 0
    loop: start=0, step=1, limit=4
    $region2: #{tpu_custom_call.1} parent=1 // loop_pre_header
      _
    $region3: #{tpu_custom_call.1} parent=1 // loop_header
      %s16 = sphi 0, %s20
      %p17 = scmp.ge.s32.totalorder %s16, 4
      %s26 = sphi 0, %s28
      %s29 = sphi 0, %s26
      %s30 = sphi 0, %s29
      %s46 = sphi 0, %s30
      %s50 = sphi 0, %s50
      %s52 = sphi 0, %s50
      %s53 = sphi 0, %s52
      %s67 = sphi 0, %s53
      %s71 = sphi 0, %s71
      %s73 = sphi 0, %s71
      %s74 = sphi 0, %s73
      %s88 = sphi 0, %s74
      %s94 = sphi 0, %s96
      %s97 = sphi 0, %s94
      %s98 = sphi 0, %s97
      %s114 = sphi 0, %s98
    $region4: #{tpu_custom_call.1} parent=1 // loop_header_branch
      %19 = sbr.rel (%p17) target = $region8
    $region5: #{tpu_custom_call.1} parent=1 // loop_body
      %s21 = ssub.s32 %s16, 1
      %s22 = ssub.s32 %s16, 2
      %s23 = sadd.s32 %s16, 1
      %s24 = ssub.s32 %s16, %s23
      %p25 = scmp.eq.s32.totalorder %s24, 0
      %s27 = sadd.s32 %s26, 1
      %s28 = scalar_select %p25, %s26, %s27
      %p31 = pneg %p25
      %p32 = scmp.eq.s32.totalorder %s16, 1
      %p33 = por %p31, %p32
      %p34 = scmp.ne.s32.totalorder %s26, %s29
      %p35 = scmp.eq.s32.totalorder %s16, 0
      %p36 = por %p34, %p35
      %p37 = scmp.ne.s32.totalorder %s26, %s29
      %p38 = scmp.eq.s32.totalorder %s21, 1
      %p39 = por %p37, %p38
      %p40 = scmp.ne.s32.totalorder %s29, %s30
      %p41 = scmp.eq.s32.totalorder %s21, 0
      %p42 = por %p40, %p41
      %p43 = scmp.ne.s32.totalorder %s29, %s30
      %p44 = scmp.eq.s32.totalorder %s22, 1
      %p45 = por %p43, %p44
      %p47 = scmp.ne.s32.totalorder %s30, %s46
      %p48 = scmp.eq.s32.totalorder %s22, 0
      %p49 = por %p47, %p48
      %s51 = sadd.s32 %s50, 1
      %p54 = scmp.eq.s32.totalorder %s16, 1
      %p55 = scmp.ne.s32.totalorder %s50, %s52
      %p56 = scmp.eq.s32.totalorder %s16, 0
      %p57 = por %p55, %p56
      %p58 = scmp.ne.s32.totalorder %s50, %s52
      %p59 = scmp.eq.s32.totalorder %s21, 1
      %p60 = por %p58, %p59
      %p61 = scmp.ne.s32.totalorder %s52, %s53
      %p62 = scmp.eq.s32.totalorder %s21, 0
      %p63 = por %p61, %p62
      %p64 = scmp.ne.s32.totalorder %s52, %s53
      %p65 = scmp.eq.s32.totalorder %s22, 1
      %p66 = por %p64, %p65
      %p68 = scmp.ne.s32.totalorder %s53, %s67
      %p69 = scmp.eq.s32.totalorder %s22, 0
      %p70 = por %p68, %p69
      %s72 = sadd.s32 %s71, 1
      %p75 = scmp.eq.s32.totalorder %s16, 1
      %p76 = scmp.ne.s32.totalorder %s71, %s73
      %p77 = scmp.eq.s32.totalorder %s16, 0
      %p78 = por %p76, %p77
      %p79 = scmp.ne.s32.totalorder %s71, %s73
      %p80 = scmp.eq.s32.totalorder %s21, 1
      %p81 = por %p79, %p80
      %p82 = scmp.ne.s32.totalorder %s73, %s74
      %p83 = scmp.eq.s32.totalorder %s21, 0
      %p84 = por %p82, %p83
      %p85 = scmp.ne.s32.totalorder %s73, %s74
      %p86 = scmp.eq.s32.totalorder %s22, 1
      %p87 = por %p85, %p86
      %p89 = scmp.ne.s32.totalorder %s74, %s88
      %p90 = scmp.eq.s32.totalorder %s22, 0
      %p91 = por %p89, %p90
      %s92 = ssub.s32 %s16, %s23
      %p93 = scmp.eq.s32.totalorder %s92, 0
      %s95 = sadd.s32 %s94, 1
      %s96 = scalar_select %p93, %s94, %s95
      %p99 = pneg %p93
      %p100 = scmp.eq.s32.totalorder %s16, 1
      %p101 = por %p99, %p100
      %p102 = scmp.ne.s32.totalorder %s94, %s97
      %p103 = scmp.eq.s32.totalorder %s16, 0
      %p104 = por %p102, %p103
      %p105 = scmp.ne.s32.totalorder %s94, %s97
      %p106 = scmp.eq.s32.totalorder %s21, 1
      %p107 = por %p105, %p106
      %p108 = scmp.ne.s32.totalorder %s97, %s98
      %p109 = scmp.eq.s32.totalorder %s21, 0
      %p110 = por %p108, %p109
      %p111 = scmp.ne.s32.totalorder %s97, %s98
      %p112 = scmp.eq.s32.totalorder %s22, 1
      %p113 = por %p111, %p112
      %p115 = scmp.ne.s32.totalorder %s98, %s114
      %p116 = scmp.eq.s32.totalorder %s22, 0
      %p117 = por %p115, %p116
      %p118 = scmp.le.s32.totalorder 1, %s16
      %p119 = scmp.lt.s32.totalorder %s16, 3
      %p120 = pnand %p118, %p119
      %p121 = pneg %p120
      // Predicated region
      $region9: #{tpu_custom_call.1} parent=5 // pred_check
        _
      $region10: #{tpu_custom_call.1} parent=5 // pred_check_branch
        %123 = sbr.rel (%p120) target = $region12
      $region11: #{tpu_custom_call.1} parent=5 // pred_region
        %s124 = ssub.s32 %s16, 1
        // Predicated region
        $region13: #{tpu_custom_call.1} parent=11 // pred_check
          %p125 = pneg %p63
        $region14: #{tpu_custom_call.1} parent=11 // pred_check_branch
          %127 = sbr.rel (%p125) target = $region16
        $region15: #{tpu_custom_call.1} parent=11 // pred_region
          %s129 = ssub.s32 512, 512
          %130 = vsyncadd [#allocation6], %s129
          %s131 = sshll.u32 [#allocation5], 4
          %s132 = int_to_ptr.vmem [resolvable:$true] %s131
          %137 = dma.hbm_to_vmem [thread:$0]  %s1, 512, %s132, [#allocation6], 128, 128, 8
        $region16: #{tpu_custom_call.1} parent=11 // pred_fallthru
          _
        // Predicated region
        $region17: #{tpu_custom_call.1} parent=11 // pred_check
          %p138 = pneg %p84
        $region18: #{tpu_custom_call.1} parent=11 // pred_check_branch
          %140 = sbr.rel (%p138) target = $region20
        $region19: #{tpu_custom_call.1} parent=11 // pred_region
          %s142 = ssub.s32 512, 512
          %143 = vsyncadd [#allocation6], %s142
          %s144 = sshll.u32 [#allocation7], 4
          %s145 = int_to_ptr.vmem [resolvable:$true] %s144
          %150 = dma.hbm_to_vmem [thread:$0]  %s2, 512, %s145, [#allocation6], 128, 128, 8
        $region20: #{tpu_custom_call.1} parent=11 // pred_fallthru
          _
      $region12: #{tpu_custom_call.1} parent=5 // pred_fallthru
        _
      %p151 = scmp.lt.s32.totalorder %s16, 2
      // Predicated region
      $region21: #{tpu_custom_call.1} parent=5 // pred_check
        %p152 = pneg %p151
      $region22: #{tpu_custom_call.1} parent=5 // pred_check_branch
        %154 = sbr.rel (%p152) target = $region24
      $region23: #{tpu_custom_call.1} parent=5 // pred_region
        // Predicated region
        $region25: #{tpu_custom_call.1} parent=23 // pred_check
          %p155 = pneg %p36
        $region26: #{tpu_custom_call.1} parent=23 // pred_check_branch
          %157 = sbr.rel (%p155) target = $region28
        $region27: #{tpu_custom_call.1} parent=23 // pred_region
          %s158 = sand.u32 %s26, 1
          %s159 = scalar_lea.sflag [#allocation3], %s158
          %s160 = sand.u32 %s26, 1
          %s161 = smul.addr %s160, 8
          %s162 = scalar_lea.vmem [#allocation2], %s161
          %s164 = ssub.s32 128, 128
          %165 = vsyncadd %s159, %s164
          %s166 = smul.addr %s16, 128
          %s167 = scalar_lea.hbm %s0, %s166
          %s169 = sshll.u32 %s162, 4
          %s170 = int_to_ptr.vmem [resolvable:$true] %s169
          %172 = dma.hbm_to_vmem [thread:$0]  %s167, 128, %s170, %s159
        $region28: #{tpu_custom_call.1} parent=23 // pred_fallthru
          _
      $region24: #{tpu_custom_call.1} parent=5 // pred_fallthru
        _
      %p173 = scmp.le.s32.totalorder 1, %s16
      %p174 = scmp.lt.s32.totalorder %s16, 3
      %p175 = pnand %p173, %p174
      %p176 = pneg %p175
      // Predicated region
      $region29: #{tpu_custom_call.1} parent=5 // pred_check
        _
      $region30: #{tpu_custom_call.1} parent=5 // pred_check_branch
        %178 = sbr.rel (%p175) target = $region32
      $region31: #{tpu_custom_call.1} parent=5 // pred_region
        %s179 = ssub.s32 %s16, 1
        %s180 = sand.u32 %s29, 1
        %s181 = scalar_lea.sflag [#allocation3], %s180
        %s182 = sand.u32 %s29, 1
        %s183 = smul.addr %s182, 8
        %s184 = scalar_lea.vmem [#allocation2], %s183
        // Predicated region
        $region33: #{tpu_custom_call.1} parent=31 // pred_check
          %p185 = pneg %p42
        $region34: #{tpu_custom_call.1} parent=31 // pred_check_branch
          %187 = sbr.rel (%p185) target = $region36
        $region35: #{tpu_custom_call.1} parent=31 // pred_region
          %188 = dma.done %s181, 128
        $region36: #{tpu_custom_call.1} parent=31 // pred_fallthru
          _
        // Predicated region
        $region37: #{tpu_custom_call.1} parent=31 // pred_check
          %p189 = pneg %p63
        $region38: #{tpu_custom_call.1} parent=31 // pred_check_branch
          %191 = sbr.rel (%p189) target = $region40
        $region39: #{tpu_custom_call.1} parent=31 // pred_region
          %192 = dma.done [#allocation6], 512
        $region40: #{tpu_custom_call.1} parent=31 // pred_fallthru
          _
        // Predicated region
        $region41: #{tpu_custom_call.1} parent=31 // pred_check
          %p193 = pneg %p84
        $region42: #{tpu_custom_call.1} parent=31 // pred_check_branch
          %195 = sbr.rel (%p193) target = $region44
        $region43: #{tpu_custom_call.1} parent=31 // pred_region
          %196 = dma.done [#allocation6], 512
        $region44: #{tpu_custom_call.1} parent=31 // pred_fallthru
          _
        %s197 = sand.u32 %s29, 1
        %s198 = scalar_lea.sflag [#allocation3], %s197
        %s199 = sand.u32 %s29, 1
        %s200 = smul.addr %s199, 8
        %s201 = scalar_lea.vmem [#allocation2], %s200
        %p202 = pneg %p42
        %p203 = pneg %p39
        %p204 = pneg %p63
        %p205 = pneg %p60
        %p206 = pneg %p84
        %p207 = pneg %p81
        %p208 = pneg %p110
        %p209 = pneg %p107
        %s210 = sand.u32 %s97, 1
        %s211 = scalar_lea.sflag [#allocation4], %s210
        %s212 = sand.u32 %s97, 1
        %s213 = smul.addr %s212, 8
        %s214 = scalar_lea.vmem [#allocation8], %s213
        %v215 = vld [vmem:[%s184] sm:$0xff]
        %v216 = vld [vmem:[#allocation5] sm:$0xff]
        %v217 = vld [vmem:[#allocation5 + $0x8] sm:$0xff]
        %v218 = vld [vmem:[#allocation5 + $0x10] sm:$0xff]
        %v219 = vld [vmem:[#allocation5 + $0x18] sm:$0xff]
        %v220 = vld [vmem:[#allocation7] sm:$0xff]
        %v221 = vld [vmem:[#allocation7 + $0x8] sm:$0xff]
        %v222 = vld [vmem:[#allocation7 + $0x10] sm:$0xff]
        %v223 = vld [vmem:[#allocation7 + $0x18] sm:$0xff]
        %vm224 = vcmask 261120
        %v226 = vsel %vm224, %v216, 0
        %v229 = vsel %vm224, %v217, 0
        %v232 = vsel %vm224, %v218, 0
        %v235 = vsel %vm224, %v219, 0
        %v238 = vsel %vm224, %v215, 0
        %240 = vmatprep.subr.mxu0 0.0
        %241 = vmatpush1.xpose.msra.mxu0 %v238
        %242 = vmatprep.subr.mxu0 0.0
        %243 = vmatpush1.xpose.msra.mxu0 0.0
        %244 = vmatprep.subr.mxu0 0.0
        %245 = vmatpush1.xpose.msra.mxu0 0.0
        %246 = vmatprep.subr.mxu0 0.0
        %247 = vmatpush1.xpose.msra.mxu0 0.0
        %248 = vmatprep.subr.mxu0 0.0
        %249 = vmatpush1.xpose.msra.mxu0 0.0
        %250 = vmatprep.subr.mxu0 0.0
        %251 = vmatpush1.xpose.msra.mxu0 0.0
        %252 = vmatprep.subr.mxu0 0.0
        %253 = vmatpush1.xpose.msra.mxu0 0.0
        %254 = vmatprep.subr.mxu0 0.0
        %255 = vmatpush1.xpose.msra.mxu0 0.0
        %256 = vmatprep.subr.mxu0 0.0
        %257 = vmatpush1.xpose.msra.mxu0 0.0
        %258 = vmatprep.subr.mxu0 0.0
        %259 = vmatpush1.xpose.msra.mxu0 0.0
        %260 = vmatprep.subr.mxu0 0.0
        %261 = vmatpush1.xpose.msra.mxu0 0.0
        %262 = vmatprep.subr.mxu0 0.0
        %263 = vmatpush1.xpose.msra.mxu0 0.0
        %264 = vmatprep.subr.mxu0 0.0
        %265 = vmatpush1.xpose.msra.mxu0 0.0
        %266 = vmatprep.subr.mxu0 0.0
        %267 = vmatpush1.xpose.msra.mxu0 0.0
        %268 = vmatprep.subr.mxu0 0.0
        %269 = vmatpush1.xpose.msra.mxu0 0.0
        %270 = vmatprep.subr.mxu0 0.0
        %271 = vmatpush1.xpose.msra.mxu0 0.0
        %272 = vmatprep.subr.mxu0 0.0
        %273 = vmatpush1.xpose.msra.mxu0 0.0
        %274 = vmatprep.subr.mxu0 0.0
        %275 = vmatpush1.xpose.msra.mxu0 0.0
        %276 = vmatprep.subr.mxu0 0.0
        %277 = vmatpush1.xpose.msra.mxu0 0.0
        %278 = vmatprep.subr.mxu0 0.0
        %279 = vmatpush1.xpose.msra.mxu0 0.0
        %280 = vmatprep.subr.mxu0 0.0
        %281 = vmatpush1.xpose.msra.mxu0 0.0
        %282 = vmatprep.subr.mxu0 0.0
        %283 = vmatpush1.xpose.msra.mxu0 0.0
        %284 = vmatprep.subr.mxu0 0.0
        %285 = vmatpush1.xpose.msra.mxu0 0.0
        %286 = vmatprep.subr.mxu0 0.0
        %287 = vmatpush1.xpose.msra.mxu0 0.0
        %288 = vmatprep.subr.mxu0 0.0
        %289 = vmatpush1.xpose.msra.mxu0 0.0
        %290 = vmatprep.subr.mxu0 0.0
        %291 = vmatpush1.xpose.msra.mxu0 0.0
        %292 = vmatprep.subr.mxu0 0.0
        %293 = vmatpush1.xpose.msra.mxu0 0.0
        %294 = vmatprep.subr.mxu0 0.0
        %295 = vmatpush1.xpose.msra.mxu0 0.0
        %296 = vmatprep.subr.mxu0 0.0
        %297 = vmatpush1.xpose.msra.mxu0 0.0
        %298 = vmatprep.subr.mxu0 0.0
        %299 = vmatpush1.xpose.msra.mxu0 0.0
        %300 = vmatprep.subr.mxu0 0.0
        %301 = vmatpush1.xpose.msra.mxu0 0.0
        %302 = vmatprep.subr.mxu0 0.0
        %303 = vmatpush1.xpose.msra.mxu0 0.0
        %304 = vmatprep.mubr.f32.mxu0 0.0
        %305 = vmatmul.mubr.f32.gmra.mrb[0].mxu0 %v226
        %v306 = vpop.f32.mrb[0].mxu0
        %v307 = vadd.f32 0.0, %v306
        %v308 = vpop.f32.mrb[0].mxu0
        %309 = vmatprep.mubr.f32.mxu0 0.0
        %310 = vmatmul.mubr.f32.gmra.mrb[0].mxu0 %v229
        %v311 = vpop.f32.mrb[0].mxu0
        %v312 = vadd.f32 0.0, %v311
        %v313 = vpop.f32.mrb[0].mxu0
        %314 = vmatprep.mubr.f32.mxu0 0.0
        %315 = vmatmul.mubr.f32.gmra.mrb[0].mxu0 %v232
        %v316 = vpop.f32.mrb[0].mxu0
        %v317 = vadd.f32 0.0, %v316
        %v318 = vpop.f32.mrb[0].mxu0
        %319 = vmatprep.mubr.f32.mxu0 0.0
        %320 = vmatmul.mubr.f32.gmra.mrb[0].mxu0 %v235
        %v321 = vpop.f32.mrb[0].mxu0
        %v322 = vadd.f32 0.0, %v321
        %v323 = vpop.f32.mrb[0].mxu0
        %324 = vdwg.mxu0
        %v325 = vlaneseq
        %v326 = vshrl.u32 %v325, 7
        %v327 = vadd.s32 %v326, 8
        %v328 = vadd.s32 %v326, 16
        %v329 = vadd.s32 %v326, 24
        %vm330 = vcmp.gt.f32.partialorder %v307, 0.0
        %vm331 = vcmp.gt.f32.partialorder %v312, 0.0
        %vm332 = vcmp.gt.f32.partialorder %v317, 0.0
        %vm333 = vcmp.gt.f32.partialorder %v322, 0.0
        %v334 = vsel %vm330, 1, 0
        %v335 = vsel %vm331, 1, 0
        %v336 = vsel %vm332, 1, 0
        %v337 = vsel %vm333, 1, 0
        %vm338 = vcmp.eq.s32.totalorder %v326, 0
        %vm339 = vcmp.eq.s32.totalorder %v327, 0
        %vm340 = vcmp.eq.s32.totalorder %v328, 0
        %vm341 = vcmp.eq.s32.totalorder %v329, 0
        %v342 = vsel %vm338, %v307, 0.0
        %v343 = vsel %vm339, %v312, 0.0
        %v344 = vsel %vm340, %v317, 0.0
        %v345 = vsel %vm341, %v322, 0.0
        %v346 = vadd.f32 %v342, 0.0
        %v347 = vadd.f32 %v343, 0.0
        %v348 = vadd.f32 %v344, 0.0
        %v349 = vadd.f32 %v345, 0.0
        %v350 = vsel %vm338, %v334, 0
        %v351 = vsel %vm339, %v335, 0
        %v352 = vsel %vm340, %v336, 0
        %v353 = vsel %vm341, %v337, 0
        %vm354 = vcmask 64512
        %v355 = vsel %vm354, %v350, 0
        %v356 = vsel %vm354, %v351, 0
        %v357 = vsel %vm354, %v352, 0
        %v358 = vsel %vm354, %v353, 0
        %v359 = vadd.s32 %v355, %v356
        %v360 = vadd.s32 %v357, %v358
        %v361 = vadd.s32 %v359, %v360
        %v362 = vrot.slane %v361, 4
        %v363 = vadd.s32 %v361, %v362
        %v364 = vrot.slane %v363, 2
        %v365 = vadd.s32 %v363, %v364
        %v366 = vrot.slane %v365, 1
        %v367 = vadd.s32 %v365, %v366
        %v368 = vadd.s32 %v367, 1
        %vm369 = vcmp.eq.s32.totalorder %v326, %v368
        %vm370 = vcmp.eq.s32.totalorder %v327, %v368
        %vm371 = vcmp.eq.s32.totalorder %v328, %v368
        %vm372 = vcmp.eq.s32.totalorder %v329, %v368
        %v373 = vsel %vm369, %v307, 0.0
        %v374 = vsel %vm370, %v312, 0.0
        %v375 = vsel %vm371, %v317, 0.0
        %v376 = vsel %vm372, %v322, 0.0
        %v377 = vadd.f32 %v346, %v373
        %v378 = vadd.f32 %v347, %v374
        %v379 = vadd.f32 %v348, %v375
        %v380 = vadd.f32 %v349, %v376
        %v381 = vsel %vm369, %v334, 0
        %v382 = vsel %vm370, %v335, 0
        %v383 = vsel %vm371, %v336, 0
        %v384 = vsel %vm372, %v337, 0
        %v385 = vsel %vm354, %v381, 0
        %v386 = vsel %vm354, %v382, 0
        %v387 = vsel %vm354, %v383, 0
        %v388 = vsel %vm354, %v384, 0
        %v389 = vadd.s32 %v385, %v386
        %v390 = vadd.s32 %v387, %v388
        %v391 = vadd.s32 %v389, %v390
        %v392 = vrot.slane %v391, 4
        %v393 = vadd.s32 %v391, %v392
        %v394 = vrot.slane %v393, 2
        %v395 = vadd.s32 %v393, %v394
        %v396 = vrot.slane %v395, 1
        %v397 = vadd.s32 %v395, %v396
        %v398 = vmul.u32 %v368, 2
        %v399 = vadd.s32 %v398, 1
        %v400 = vadd.s32 %v399, %v397
        %vm401 = vcmp.eq.s32.totalorder %v326, %v400
        %vm402 = vcmp.eq.s32.totalorder %v327, %v400
        %vm403 = vcmp.eq.s32.totalorder %v328, %v400
        %vm404 = vcmp.eq.s32.totalorder %v329, %v400
        %v405 = vsel %vm401, %v307, 0.0
        %v406 = vsel %vm402, %v312, 0.0
        %v407 = vsel %vm403, %v317, 0.0
        %v408 = vsel %vm404, %v322, 0.0
        %v409 = vadd.f32 %v377, %v405
        %v410 = vadd.f32 %v378, %v406
        %v411 = vadd.f32 %v379, %v407
        %v412 = vadd.f32 %v380, %v408
        %v413 = vsel %vm401, %v334, 0
        %v414 = vsel %vm402, %v335, 0
        %v415 = vsel %vm403, %v336, 0
        %v416 = vsel %vm404, %v337, 0
        %v417 = vsel %vm354, %v413, 0
        %v418 = vsel %vm354, %v414, 0
        %v419 = vsel %vm354, %v415, 0
        %v420 = vsel %vm354, %v416, 0
        %v421 = vadd.s32 %v417, %v418
        %v422 = vadd.s32 %v419, %v420
        %v423 = vadd.s32 %v421, %v422
        %v424 = vrot.slane %v423, 4
        %v425 = vadd.s32 %v423, %v424
        %v426 = vrot.slane %v425, 2
        %v427 = vadd.s32 %v425, %v426
        %v428 = vrot.slane %v427, 1
        %v429 = vadd.s32 %v427, %v428
        %v430 = vmul.u32 %v400, 2
        %v431 = vadd.s32 %v430, 1
        %v432 = vadd.s32 %v431, %v429
        %vm433 = vcmp.eq.s32.totalorder %v326, %v432
        %vm434 = vcmp.eq.s32.totalorder %v327, %v432
        %vm435 = vcmp.eq.s32.totalorder %v328, %v432
        %vm436 = vcmp.eq.s32.totalorder %v329, %v432
        %v437 = vsel %vm433, %v307, 0.0
        %v438 = vsel %vm434, %v312, 0.0
        %v439 = vsel %vm435, %v317, 0.0
        %v440 = vsel %vm436, %v322, 0.0
        %v441 = vadd.f32 %v409, %v437
        %v442 = vadd.f32 %v410, %v438
        %v443 = vadd.f32 %v411, %v439
        %v444 = vadd.f32 %v412, %v440
        %v445 = vsel %vm433, %v334, 0
        %v446 = vsel %vm434, %v335, 0
        %v447 = vsel %vm435, %v336, 0
        %v448 = vsel %vm436, %v337, 0
        %v449 = vsel %vm354, %v445, 0
        %v450 = vsel %vm354, %v446, 0
        %v451 = vsel %vm354, %v447, 0
        %v452 = vsel %vm354, %v448, 0
        %v453 = vadd.s32 %v449, %v450
        %v454 = vadd.s32 %v451, %v452
        %v455 = vadd.s32 %v453, %v454
        %v456 = vrot.slane %v455, 4
        %v457 = vadd.s32 %v455, %v456
        %v458 = vrot.slane %v457, 2
        %v459 = vadd.s32 %v457, %v458
        %v460 = vrot.slane %v459, 1
        %v461 = vadd.s32 %v459, %v460
        %v462 = vmul.u32 %v432, 2
        %v463 = vadd.s32 %v462, 1
        %v464 = vadd.s32 %v463, %v461
        %vm465 = vcmp.eq.s32.totalorder %v326, %v464
        %vm466 = vcmp.eq.s32.totalorder %v327, %v464
        %vm467 = vcmp.eq.s32.totalorder %v328, %v464
        %vm468 = vcmp.eq.s32.totalorder %v329, %v464
        %v469 = vsel %vm465, %v307, 0.0
        %v470 = vsel %vm466, %v312, 0.0
        %v471 = vsel %vm467, %v317, 0.0
        %v472 = vsel %vm468, %v322, 0.0
        %v473 = vadd.f32 %v441, %v469
        %v474 = vadd.f32 %v442, %v470
        %v475 = vadd.f32 %v443, %v471
        %v476 = vadd.f32 %v444, %v472
        %477 = vxpose.xlu0.b32.start [1/16] %v473, 128
        %478 = vxpose.xlu0.b32.cont [2/16] %v474, 128
        %479 = vxpose.xlu0.b32.cont [3/16] %v475, 128
        %480 = vxpose.xlu0.b32.cont [4/16] %v476, 128
        %481 = vxpose.xlu0.b32.cont [5/16] 0.0, 128
        %482 = vxpose.xlu0.b32.cont [6/16] 0.0, 128
        %483 = vxpose.xlu0.b32.cont [7/16] 0.0, 128
        %484 = vxpose.xlu0.b32.cont [8/16] 0.0, 128
        %485 = vxpose.xlu0.b32.cont [9/16] 0.0, 128
        %486 = vxpose.xlu0.b32.cont [10/16] 0.0, 128
        %487 = vxpose.xlu0.b32.cont [11/16] 0.0, 128
        %488 = vxpose.xlu0.b32.cont [12/16] 0.0, 128
        %489 = vxpose.xlu0.b32.cont [13/16] 0.0, 128
        %490 = vxpose.xlu0.b32.cont [14/16] 0.0, 128
        %491 = vxpose.xlu0.b32.cont [15/16] 0.0, 128
        %492 = vxpose.xlu0.b32.end [16/16] 0.0, 128
        %v493 = vpop.trf.xlu0
        %v494 = vpop.trf.xlu0
        %v495 = vpop.trf.xlu0
        %v496 = vpop.trf.xlu0
        %v497 = vpop.trf.xlu0
        %v498 = vpop.trf.xlu0
        %v499 = vpop.trf.xlu0
        %v500 = vpop.trf.xlu0
        %v501 = vpop.trf.xlu0
        %v502 = vpop.trf.xlu0
        %v503 = vpop.trf.xlu0
        %v504 = vpop.trf.xlu0
        %v505 = vpop.trf.xlu0
        %v506 = vpop.trf.xlu0
        %v507 = vpop.trf.xlu0
        %v508 = vpop.trf.xlu0
        %v510 = vsel %vm224, %v493, 0
        %512 = vmatprep.subr.mxu0 0.0
        %513 = vmatpush1.msra.mxu0 %v220
        %514 = vmatprep.subr.mxu0 0.0
        %515 = vmatpush1.msra.mxu0 %v221
        %516 = vmatprep.subr.mxu0 0.0
        %517 = vmatpush1.msra.mxu0 %v222
        %518 = vmatprep.subr.mxu0 0.0
        %519 = vmatpush1.msra.mxu0 %v223
        %520 = vmatprep.subr.mxu0 0.0
        %521 = vmatpush1.msra.mxu0 0.0
        %522 = vmatprep.subr.mxu0 0.0
        %523 = vmatpush1.msra.mxu0 0.0
        %524 = vmatprep.subr.mxu0 0.0
        %525 = vmatpush1.msra.mxu0 0.0
        %526 = vmatprep.subr.mxu0 0.0
        %527 = vmatpush1.msra.mxu0 0.0
        %528 = vmatprep.subr.mxu0 0.0
        %529 = vmatpush1.msra.mxu0 0.0
        %530 = vmatprep.subr.mxu0 0.0
        %531 = vmatpush1.msra.mxu0 0.0
        %532 = vmatprep.subr.mxu0 0.0
        %533 = vmatpush1.msra.mxu0 0.0
        %534 = vmatprep.subr.mxu0 0.0
        %535 = vmatpush1.msra.mxu0 0.0
        %536 = vmatprep.subr.mxu0 0.0
        %537 = vmatpush1.msra.mxu0 0.0
        %538 = vmatprep.subr.mxu0 0.0
        %539 = vmatpush1.msra.mxu0 0.0
        %540 = vmatprep.subr.mxu0 0.0
        %541 = vmatpush1.msra.mxu0 0.0
        %542 = vmatprep.subr.mxu0 0.0
        %543 = vmatpush1.msra.mxu0 0.0
        %544 = vmatprep.subr.mxu0 0.0
        %545 = vmatpush1.msra.mxu0 0.0
        %546 = vmatprep.subr.mxu0 0.0
        %547 = vmatpush1.msra.mxu0 0.0
        %548 = vmatprep.subr.mxu0 0.0
        %549 = vmatpush1.msra.mxu0 0.0
        %550 = vmatprep.subr.mxu0 0.0
        %551 = vmatpush1.msra.mxu0 0.0
        %552 = vmatprep.subr.mxu0 0.0
        %553 = vmatpush1.msra.mxu0 0.0
        %554 = vmatprep.subr.mxu0 0.0
        %555 = vmatpush1.msra.mxu0 0.0
        %556 = vmatprep.subr.mxu0 0.0
        %557 = vmatpush1.msra.mxu0 0.0
        %558 = vmatprep.subr.mxu0 0.0
        %559 = vmatpush1.msra.mxu0 0.0
        %560 = vmatprep.subr.mxu0 0.0
        %561 = vmatpush1.msra.mxu0 0.0
        %562 = vmatprep.subr.mxu0 0.0
        %563 = vmatpush1.msra.mxu0 0.0
        %564 = vmatprep.subr.mxu0 0.0
        %565 = vmatpush1.msra.mxu0 0.0
        %566 = vmatprep.subr.mxu0 0.0
        %567 = vmatpush1.msra.mxu0 0.0
        %568 = vmatprep.subr.mxu0 0.0
        %569 = vmatpush1.msra.mxu0 0.0
        %570 = vmatprep.subr.mxu0 0.0
        %571 = vmatpush1.msra.mxu0 0.0
        %572 = vmatprep.subr.mxu0 0.0
        %573 = vmatpush1.msra.mxu0 0.0
        %574 = vmatprep.subr.mxu0 0.0
        %575 = vmatpush1.msra.mxu0 0.0
        %576 = vmatprep.mubr.f32.mxu0 0.0
        %577 = vmatmul.mubr.f32.gmra.mrb[0].mxu0 %v510
        %v578 = vpop.f32.mrb[0].mxu0
        %v579 = vadd.f32 0.0, %v578
        %v580 = vpop.f32.mrb[0].mxu0
        %581 = vdwg.mxu0
        %582 = vst.msk [vmem:[%s214] sm:$0xff] %vm224, %v579
        %s583 = sand.u32 %s97, 1
        %s584 = scalar_lea.sflag [#allocation4], %s583
        %s585 = sand.u32 %s97, 1
        %s586 = smul.addr %s585, 8
        %s587 = scalar_lea.vmem [#allocation8], %s586
        // Predicated region
        $region45: #{tpu_custom_call.1} parent=31 // pred_check
          %p588 = pneg %p107
        $region46: #{tpu_custom_call.1} parent=31 // pred_check_branch
          %590 = sbr.rel (%p588) target = $region48
        $region47: #{tpu_custom_call.1} parent=31 // pred_region
          %s592 = ssub.s32 128, 128
          %593 = vsyncadd %s584, %s592
          %s594 = smul.addr %s21, 128
          %s595 = scalar_lea.hbm %s3, %s594
          %s597 = sshll.u32 %s587, 4
          %s598 = int_to_ptr.vmem [resolvable:$true] %s597
          %600 = dma.vmem_to_hbm [thread:$0]  %s598, 128, %s595, %s584
        $region48: #{tpu_custom_call.1} parent=31 // pred_fallthru
          _
      $region32: #{tpu_custom_call.1} parent=5 // pred_fallthru
        _
      %p601 = scmp.le.s32.totalorder 2, %s16
      // Predicated region
      $region49: #{tpu_custom_call.1} parent=5 // pred_check
        %p602 = pneg %p601
      $region50: #{tpu_custom_call.1} parent=5 // pred_check_branch
        %604 = sbr.rel (%p602) target = $region52
      $region51: #{tpu_custom_call.1} parent=5 // pred_region
        %s605 = ssub.s32 %s16, 2
        // Predicated region
        $region53: #{tpu_custom_call.1} parent=51 // pred_check
          %p606 = pneg %p113
        $region54: #{tpu_custom_call.1} parent=51 // pred_check_branch
          %608 = sbr.rel (%p606) target = $region56
        $region55: #{tpu_custom_call.1} parent=51 // pred_region
          %s609 = sand.u32 %s98, 1
          %s610 = scalar_lea.sflag [#allocation4], %s609
          %s611 = sand.u32 %s98, 1
          %s612 = smul.addr %s611, 8
          %s613 = scalar_lea.vmem [#allocation8], %s612
          %614 = dma.done %s610, 128
        $region56: #{tpu_custom_call.1} parent=51 // pred_fallthru
          _
      $region52: #{tpu_custom_call.1} parent=5 // pred_fallthru
        _
    $region6: #{tpu_custom_call.1} parent=1 // loop_footer
      %s20 = sadd.s32 1, %s16
    $region7: #{tpu_custom_call.1} parent=1 // loop_footer_branch
      %15 = sbr.rel target = $region3
    $region8: #{tpu_custom_call.1} parent=1 // loop_exit
      _
    %615 = vsyncpa [#allocation3], 1
    %s616 = scalar_lea.sflag [#allocation3], 1
    %617 = vsyncpa %s616, 1
    %618 = vsyncpa [#allocation6], 1
    %619 = vsyncpa [#allocation4], 1
    %s620 = scalar_lea.sflag [#allocation4], 1
    %621 = vsyncpa %s620, 1

</llo_original>
